<compile_context>
chip_gen: v5e
topology: v5e:2x2
jax: 0.10.0
libtpu: 0.0.40
codegen_flags: <defaults>
</compile_context>

<pallas_src>
import numpy as np
import jax
import jax.numpy as jnp
from jax import lax
from jax.experimental import pallas as pl
from jax.experimental.pallas import tpu as pltpu

VOCAB_SIZE = 20              # small synthetic vocab
EMBED_SIZE = 64
HIDDEN_SIZE = 128
NUM_ACTIONS = VOCAB_SIZE - 1  # fc out_features (19)
FC_PAD = 128                  # lane-dense padded fc width


# ----------------------------------------------------------------------------
# Pallas kernel: LSTM recurrence (only h @ W_hh on the serial path) + FC head.
# ----------------------------------------------------------------------------
def lstm_head_kernel(seqlen_ref, gx_ref, whh_ref, wfc_ref, bfc_ref, out_ref):
    """
    seqlen_ref : (1,) int32 in SMEM  -- number of valid timesteps (>= 0)
    gx_ref     : (T, B, 4H) f32      -- precomputed x_t @ W_ih + b, gates (i,f,o,g)
    whh_ref    : (H, 4H) bf16
    wfc_ref    : (H, FC_PAD) bf16    -- first NUM_ACTIONS cols real, rest zero
    bfc_ref    : (1, FC_PAD) f32
    out_ref    : (B, FC_PAD) f32
    """
    T, B, _ = gx_ref.shape
    H = whh_ref.shape[0]

    seq_len = seqlen_ref[0]

    def step(t, carry):
        h, c = carry
        # bf16 operands, f32 accumulate. Read W_hh from VMEM each step (do not
        # pin 64+ vregs of weights across the loop).
        gates = gx_ref[t] + jnp.dot(h.astype(jnp.bfloat16), whh_ref[...],
                                    preferred_element_type=jnp.float32)
        # Gate order (i, f, o, g): one wide sigmoid launch + one tanh launch,
        # all in f32 (v5e EUP has no bf16 path).
        sig = jax.nn.sigmoid(gates[:, 0:3 * H])
        i_g = sig[:, 0:H]
        f_g = sig[:, H:2 * H]
        o_g = sig[:, 2 * H:3 * H]
        g_g = jnp.tanh(gates[:, 3 * H:4 * H])
        c_new = f_g * c + i_g * g_g
        h_new = o_g * jnp.tanh(c_new)
        return h_new, c_new

    h0 = jnp.zeros((B, H), jnp.float32)
    c0 = jnp.zeros((B, H), jnp.float32)
    # Dynamic trip count: padded steps are skipped entirely (no masking work).
    h, _ = lax.fori_loop(0, seq_len, step, (h0, c0))

    # Lane-dense (B, 128) output store; real columns sliced in the wrapper.
    out_ref[...] = (jnp.dot(h.astype(jnp.bfloat16), wfc_ref[...],
                            preferred_element_type=jnp.float32)
                    + bfc_ref[...]).astype(out_ref.dtype)


# ----------------------------------------------------------------------------
# Wrapper: fully traceable (jit-able), no host round-trip, no recompiles.
# ----------------------------------------------------------------------------
def policy_forward_pallas(tokens, params):
    """PolicyNetwork.forward for 1-D / 2-D integer `seq`.

    Matching the PyTorch code, seq_len is taken from the first row (index of
    the first 0 token, or full length) and applied to all rows. Returns logits
    of shape (B, vocab_size - 1), or (vocab_size - 1,) for 1-D input (PyTorch
    squeezes the batch dim in that case).
    """
    tokens = jnp.asarray(tokens, jnp.int32)
    squeeze_out = tokens.ndim == 1
    if squeeze_out:
        tokens = tokens[None, :]
    B, T = tokens.shape

    # seq_len from row 0 (traced -> stays on device, works under jit).
    row0 = tokens[0]
    has_zero = jnp.any(row0 == 0)
    first_zero = jnp.argmax(row0 == 0)
    seq_len = jnp.where(has_zero, first_zero, T).astype(jnp.int32).reshape(1)

    # Pad batch to a multiple of 8 sublanes; padded rows use token 0
    # (gate_table[0] == bias == 0) and are sliced off afterwards.
    B_pad = ((B + 7) // 8) * 8
    tokens_pad = jnp.zeros((B_pad, T), jnp.int32).at[:B, :].set(tokens)

    # Embedding + input projection is a single table gather (glue, in JAX):
    # gate_table[v] = embed[v] @ W_ih + (b_ih + b_hh), gate order (i,f,o,g).
    # Indexing with tokens.T yields (T, B_pad, 4H) directly -> no transpose op.
    gx = params["gate_table"][tokens_pad.T]      # (T, B_pad, 4H) f32

    smem = pl.BlockSpec(memory_space=pltpu.MemorySpace.SMEM)
    vmem = pl.BlockSpec(memory_space=pltpu.MemorySpace.VMEM)
    out_pad = pl.pallas_call(
        lstm_head_kernel,
        out_shape=jax.ShapeDtypeStruct((B_pad, FC_PAD), jnp.float32),
        in_specs=[smem, vmem, vmem, vmem, vmem],
        out_specs=vmem,
        compiler_params=pltpu.CompilerParams(vmem_limit_bytes=32 * 1024 * 1024),
    )(seq_len, gx, params["w_hh"], params["w_fc_pad"], params["b_fc_pad"])

    logits = out_pad[:B, :NUM_ACTIONS]
    return logits[0] if squeeze_out else logits


# ----------------------------------------------------------------------------
# Deterministic parameter init (mirrors PolicyNetwork.__init__).
# ----------------------------------------------------------------------------
def _xavier_uniform_torch(key, torch_shape):
    fan_out, fan_in = torch_shape
    bound = float(np.sqrt(6.0 / (fan_in + fan_out)))
    return jax.random.uniform(key, torch_shape, jnp.float32, -bound, bound)


def _reorder_gates_ifog(w):
    """Rows of PyTorch LSTM weights are (i, f, g, o); reorder to (i, f, o, g)."""
    H = w.shape[0] // 4
    return jnp.concatenate([w[0:H], w[H:2 * H], w[3 * H:4 * H], w[2 * H:3 * H]], 0)


def init_params(key, vocab_size=VOCAB_SIZE, embed_size=EMBED_SIZE,
                hidden_size=HIDDEN_SIZE):
    k_emb, k_ih, k_hh, k_fc = jax.random.split(key, 4)

    embed = jax.random.normal(k_emb, (vocab_size, embed_size), jnp.float32)
    embed = embed.at[0].set(0.0)               # nn.init.zeros_(embed.weight[0])

    # Stored as (in_features, 4H), gate columns ordered (i, f, o, g).
    w_ih = _reorder_gates_ifog(
        _xavier_uniform_torch(k_ih, (4 * hidden_size, embed_size))).T     # (E, 4H)
    w_hh = _reorder_gates_ifog(
        _xavier_uniform_torch(k_hh, (4 * hidden_size, hidden_size))).T    # (H, 4H)
    b_gates = jnp.zeros((1, 4 * hidden_size), jnp.float32)  # b_ih + b_hh (zero-init)

    # Precomputed input-projection table (f32 for accuracy): removes x@W_ih
    # and the bias add from the serial recurrence entirely.
    gate_table = jnp.dot(embed, w_ih,
                         precision=jax.lax.Precision.HIGHEST) + b_gates   # (V, 4H)

    # FC head, padded to a lane-dense 128-wide output.
    w_fc = _xavier_uniform_torch(k_fc, (vocab_size - 1, hidden_size)).T   # (H, V-1)
    b_fc = jnp.zeros((1, vocab_size - 1), jnp.float32)
    w_fc_pad = jnp.zeros((hidden_size, FC_PAD), jnp.float32)
    w_fc_pad = w_fc_pad.at[:, :vocab_size - 1].set(w_fc)
    b_fc_pad = jnp.zeros((1, FC_PAD), jnp.float32)
    b_fc_pad = b_fc_pad.at[:, :vocab_size - 1].set(b_fc)

    return dict(
        embed=embed, w_ih=w_ih,
        w_hh=w_hh.astype(jnp.bfloat16),          # bf16 MXU operand
        b_gates=b_gates,
        gate_table=gate_table,                   # f32
        w_fc_pad=w_fc_pad.astype(jnp.bfloat16),  # bf16 MXU operand
        b_fc_pad=b_fc_pad,                       # f32 bias
        w_hh_f32=w_hh, w_fc_f32=w_fc, b_fc_f32=b_fc,  # reference copies
    )


# ----------------------------------------------------------------------------
# Pure-JAX f32 reference (correctness check only).
# ----------------------------------------------------------------------------
def policy_forward_ref(tokens, params):
    tokens = jnp.asarray(tokens, jnp.int32)
    B, T = tokens.shape
    row = np.asarray(tokens[0]).tolist()
    seq_len = row.index(0) if 0 in row else T
    H = HIDDEN_SIZE
    x = params["embed"][tokens]                 # (B, T, E)
    h = jnp.zeros((B, H), jnp.float32)
    c = jnp.zeros((B, H), jnp.float32)
    hi = jax.lax.Precision.HIGHEST
    for t in range(seq_len):
        g = (jnp.dot(x[:, t, :], params["w_ih"], precision=hi)
             + jnp.dot(h, params["w_hh_f32"], precision=hi) + params["b_gates"])
        i_g = jax.nn.sigmoid(g[:, 0:H])
        f_g = jax.nn.sigmoid(g[:, H:2 * H])
        o_g = jax.nn.sigmoid(g[:, 2 * H:3 * H])
        g_g = jnp.tanh(g[:, 3 * H:4 * H])
        c = f_g * c + i_g * g_g
        h = o_g * jnp.tanh(c)
    return jnp.dot(h, params["w_fc_f32"], precision=hi) + params["b_fc_f32"]


if __name__ == "__main__":
    key = jax.random.PRNGKey(0)
    k_params, k_tok = jax.random.split(key)
    params = init_params(k_params)

    B, T = 2, 8
    # tokens in [1, vocab) -> no padding zeros, so seq_len == T.
    tokens = jax.random.randint(k_tok, (B, T), 1, VOCAB_SIZE, dtype=jnp.int32)

    fwd = jax.jit(policy_forward_pallas)

    # Case 1: full-length sequence.
    logits = jax.block_until_ready(fwd(tokens, params))
    ref = policy_forward_ref(tokens, params)
    np.testing.assert_allclose(np.asarray(logits), np.asarray(ref),
                               rtol=3e-2, atol=3e-2)   # bf16 MXU operands
    assert logits.shape == (B, NUM_ACTIONS)

    # Case 2: padded sequence (0 at position 5 of row 0 -> seq_len = 5).
    # Same compiled kernel, no retrace/recompile; padded steps are skipped.
    tokens_pad = tokens.at[0, 5].set(0)
    logits_pad = jax.block_until_ready(fwd(tokens_pad, params))
    ref_pad = policy_forward_ref(tokens_pad, params)
    np.testing.assert_allclose(np.asarray(logits_pad), np.asarray(ref_pad),
                               rtol=3e-2, atol=3e-2)

    print("KERNEL_OK")
</pallas_src>

<mosaic_0001>
module attributes {stable_mosaic.version = 11 : i64} {
  func.func @lstm_head_kernel(%arg0: memref<1xi32, #tpu.memory_space<smem>>, %arg1: memref<8x8x512xf32, #tpu.memory_space<vmem>>, %arg2: memref<128x512xbf16, #tpu.memory_space<vmem>>, %arg3: memref<128x128xbf16, #tpu.memory_space<vmem>>, %arg4: memref<1x128xf32, #tpu.memory_space<vmem>>, %arg5: memref<8x128xf32, #tpu.memory_space<vmem>>) attributes {dimension_semantics = [], scalar_prefetch = 0 : i64, scratch_operands = 0 : i64, tpu.core_type = #tpu.core_type<tc>} {
    %c0 = arith.constant 0 : index
    %0 = memref.load %arg0[%c0] : memref<1xi32, #tpu.memory_space<smem>>
    %cst = arith.constant 0.000000e+00 : f32
    %1 = vector.broadcast %cst : f32 to vector<8x128xf32>
    %cst_0 = arith.constant 0.000000e+00 : f32
    %2 = vector.broadcast %cst_0 : f32 to vector<8x128xf32>
    %c0_i32 = arith.constant 0 : i32
    %3 = arith.subi %0, %c0_i32 : i32
    %4 = arith.addi %c0_i32, %3 : i32
    %c1_i32 = arith.constant 1 : i32
    %5:2 = scf.for %arg6 = %c0_i32 to %4 step %c1_i32 iter_args(%arg7 = %1, %arg8 = %2) -> (vector<8x128xf32>, vector<8x128xf32>)  : i32 {
      %13 = arith.index_cast %arg6 : i32 to index
      %c0_8 = arith.constant 0 : index
      %c0_9 = arith.constant 0 : index
      %14 = vector.load %arg1[%13, %c0_8, %c0_9] : memref<8x8x512xf32, #tpu.memory_space<vmem>>, vector<1x8x512xf32>
      %15 = vector.shape_cast %14 : vector<1x8x512xf32> to vector<8x512xf32>
      %16 = arith.truncf %arg7 : vector<8x128xf32> to vector<8x128xbf16>
      %c0_10 = arith.constant 0 : index
      %c0_11 = arith.constant 0 : index
      %17 = vector.load %arg2[%c0_10, %c0_11] : memref<128x512xbf16, #tpu.memory_space<vmem>>, vector<128x512xbf16>
      %cst_12 = arith.constant dense<0.000000e+00> : vector<8x512xf32>
      %18 = tpu.matmul %16, %17, %cst_12 {dimension_numbers = #tpu.dot_dimension_numbers<[1], [0], [0], [1], [0, 0, 1, 1], [], []>} : vector<8x128xbf16>, vector<128x512xbf16>, vector<8x512xf32> -> vector<8x512xf32>
      %19 = arith.addf %15, %18 : vector<8x512xf32>
      %20 = vector.extract_strided_slice %19 {offsets = [0, 0], sizes = [8, 384], strides = [1, 1]} : vector<8x512xf32> to vector<8x384xf32>
      %21 = arith.negf %20 : vector<8x384xf32>
      %22 = math.exp %21 : vector<8x384xf32>
      %cst_13 = arith.constant 1.000000e+00 : f32
      %23 = vector.broadcast %cst_13 : f32 to vector<8x384xf32>
      %24 = arith.addf %23, %22 : vector<8x384xf32>
      %25 = arith.divf %23, %24 : vector<8x384xf32>
      %26 = vector.extract_strided_slice %25 {offsets = [0, 0], sizes = [8, 128], strides = [1, 1]} : vector<8x384xf32> to vector<8x128xf32>
      %27 = vector.extract_strided_slice %25 {offsets = [0, 128], sizes = [8, 128], strides = [1, 1]} : vector<8x384xf32> to vector<8x128xf32>
      %28 = vector.extract_strided_slice %25 {offsets = [0, 256], sizes = [8, 128], strides = [1, 1]} : vector<8x384xf32> to vector<8x128xf32>
      %29 = vector.extract_strided_slice %19 {offsets = [0, 384], sizes = [8, 128], strides = [1, 1]} : vector<8x512xf32> to vector<8x128xf32>
      %30 = math.tanh %29 : vector<8x128xf32>
      %31 = arith.mulf %27, %arg8 : vector<8x128xf32>
      %32 = arith.mulf %26, %30 : vector<8x128xf32>
      %33 = arith.addf %31, %32 : vector<8x128xf32>
      %34 = math.tanh %33 : vector<8x128xf32>
      %35 = arith.mulf %28, %34 : vector<8x128xf32>
      scf.yield %35, %33 : vector<8x128xf32>, vector<8x128xf32>
    }
    %6 = arith.truncf %5#0 : vector<8x128xf32> to vector<8x128xbf16>
    %c0_1 = arith.constant 0 : index
    %c0_2 = arith.constant 0 : index
    %7 = vector.load %arg3[%c0_1, %c0_2] : memref<128x128xbf16, #tpu.memory_space<vmem>>, vector<128x128xbf16>
    %cst_3 = arith.constant dense<0.000000e+00> : vector<8x128xf32>
    %8 = tpu.matmul %6, %7, %cst_3 {dimension_numbers = #tpu.dot_dimension_numbers<[1], [0], [0], [1], [0, 0, 1, 1], [], []>} : vector<8x128xbf16>, vector<128x128xbf16>, vector<8x128xf32> -> vector<8x128xf32>
    %c0_4 = arith.constant 0 : index
    %c0_5 = arith.constant 0 : index
    %9 = vector.load %arg4[%c0_4, %c0_5] : memref<1x128xf32, #tpu.memory_space<vmem>>, vector<1x128xf32>
    %10 = vector.broadcast %9 : vector<1x128xf32> to vector<8x128xf32>
    %11 = arith.addf %8, %10 : vector<8x128xf32>
    %c0_6 = arith.constant 0 : index
    %c0_7 = arith.constant 0 : index
    %12 = vector.load %arg5[%c0_6, %c0_7] : memref<8x128xf32, #tpu.memory_space<vmem>>, vector<8x128xf32>
    tpu.vector_store %arg5[%c0_6, %c0_7], %11 {strides = array<i32>} : memref<8x128xf32, #tpu.memory_space<vmem>>, vector<8x128xf32>,
    return
  }
}

</mosaic_0001>

<llo_original>
// kernel: policy_forward_pallas.1
$region0: #{policy_forward_pallas.1}
  #allocation0 [shape = 'u32[]', space=smem, size = 0x4, offset = 0x4, fixed_abs, tag = 'smem constant byte address 0x4 - core index']
  #allocation1 [shape = 'u32[72,128]{1,0:T(1,128)}', space=vmem, size = 0x9000, scoped, tag = 'internal scratch']
  #allocation2 [shape = 's32[1]{0:T(128)S(6)}', space=smem, size = 0x200, scoped, tag = 'scoped memory for policy_forward_pallas.1']
  %s0 = inlined_call_operand.<no memory space> [shape: s32[1], index: 0, kind: input, shape index: {}]
  %s1 = inlined_call_operand.vmem [shape: f32[8,8,512], index: 1, kind: input, shape index: {}]
  %s2 = inlined_call_operand.vmem [shape: bf16[128,512], index: 2, kind: input, shape index: {}]
  %s3 = inlined_call_operand.vmem [shape: bf16[128,128], index: 3, kind: input, shape index: {}]
  %s4 = inlined_call_operand.vmem [shape: f32[1,128], index: 4, kind: input, shape index: {}]
  %s5 = inlined_call_operand.vmem [shape: f32[8,128], index: 5, kind: output, shape index: {}]
  %s6 = sld [smem:[#allocation0]]
  $region37: #{policy_forward_pallas.1} parent=0
    _
  %s8 = ssub.s32 1, %s6
  %s9 = scalar_select 0, %s8, %s6
  %10 = sst [smem:[#allocation2]] %s0
  // Predicated region
  $region2: #{policy_forward_pallas.1} parent=0 // pred_check
    _
  $region3: #{policy_forward_pallas.1} parent=0 // pred_check_branch
    %12 = sbr.rel (0) target = $region5
  $region4: #{policy_forward_pallas.1} parent=0 // pred_region
    _
  $region5: #{policy_forward_pallas.1} parent=0 // pred_fallthru
    _
  // Predicated region
  $region6: #{policy_forward_pallas.1} parent=0 // pred_check
    _
  $region7: #{policy_forward_pallas.1} parent=0 // pred_check_branch
    %14 = sbr.rel (0) target = $region9
  $region8: #{policy_forward_pallas.1} parent=0 // pred_region
    _
  $region9: #{policy_forward_pallas.1} parent=0 // pred_fallthru
    _
  // Predicated region
  $region10: #{policy_forward_pallas.1} parent=0 // pred_check
    _
  $region11: #{policy_forward_pallas.1} parent=0 // pred_check_branch
    %16 = sbr.rel (0) target = $region13
  $region12: #{policy_forward_pallas.1} parent=0 // pred_region
    _
  $region13: #{policy_forward_pallas.1} parent=0 // pred_fallthru
    _
  // Predicated region
  $region14: #{policy_forward_pallas.1} parent=0 // pred_check
    _
  $region15: #{policy_forward_pallas.1} parent=0 // pred_check_branch
    %18 = sbr.rel (0) target = $region17
  $region16: #{policy_forward_pallas.1} parent=0 // pred_region
    _
  $region17: #{policy_forward_pallas.1} parent=0 // pred_fallthru
    _
  // Predicated region
  $region18: #{policy_forward_pallas.1} parent=0 // pred_check
    _
  $region19: #{policy_forward_pallas.1} parent=0 // pred_check_branch
    %20 = sbr.rel (0) target = $region21
  $region20: #{policy_forward_pallas.1} parent=0 // pred_region
    _
  $region21: #{policy_forward_pallas.1} parent=0 // pred_fallthru
    _
  %s21 = sld [smem:[#allocation2]]
  // While loop
  $region22: #{policy_forward_pallas.1} parent=0 // loop_pre_header
    _
  $region23: #{policy_forward_pallas.1} parent=0 // loop_header
    %s23 = sphi 0, %s25
    %p24 = scmp.ge.s32.totalorder %s23, %s21
    %v28 = vphi 0.0, %v348
    %v29 = vphi 0.0, %v346
  $region24: #{policy_forward_pallas.1} parent=0 // loop_header_branch
    %27 = sbr.rel (%p24) target = $region28
  $region25: #{policy_forward_pallas.1} parent=0 // loop_body
    %s30 = smul.u32 %s23, 4
    %s31 = smul.addr %s30, 8
    %s32 = scalar_lea.vmem %s1, %s31
    %v33 = vld [vmem:[%s32] sm:$0xff]
    %v34 = vld [vmem:[%s32 + $0x8] sm:$0xff]
    %v35 = vld [vmem:[%s32 + $0x10] sm:$0xff]
    %v36 = vld [vmem:[%s32 + $0x18] sm:$0xff]
    %v37 = vpack.c.bf16 %v28, %v28
    %v38 = vld [vmem:[%s2] sm:$0xff]
    %v39 = vld [vmem:[%s2 + $0x8] sm:$0xff]
    %v40 = vld [vmem:[%s2 + $0x10] sm:$0xff]
    %v41 = vld [vmem:[%s2 + $0x18] sm:$0xff]
    %v42 = vld [vmem:[%s2 + $0x20] sm:$0xff]
    %v43 = vld [vmem:[%s2 + $0x28] sm:$0xff]
    %v44 = vld [vmem:[%s2 + $0x30] sm:$0xff]
    %v45 = vld [vmem:[%s2 + $0x38] sm:$0xff]
    %v46 = vld [vmem:[%s2 + $0x40] sm:$0xff]
    %v47 = vld [vmem:[%s2 + $0x48] sm:$0xff]
    %v48 = vld [vmem:[%s2 + $0x50] sm:$0xff]
    %v49 = vld [vmem:[%s2 + $0x58] sm:$0xff]
    %v50 = vld [vmem:[%s2 + $0x60] sm:$0xff]
    %v51 = vld [vmem:[%s2 + $0x68] sm:$0xff]
    %v52 = vld [vmem:[%s2 + $0x70] sm:$0xff]
    %v53 = vld [vmem:[%s2 + $0x78] sm:$0xff]
    %v54 = vld [vmem:[%s2 + $0x80] sm:$0xff]
    %v55 = vld [vmem:[%s2 + $0x88] sm:$0xff]
    %v56 = vld [vmem:[%s2 + $0x90] sm:$0xff]
    %v57 = vld [vmem:[%s2 + $0x98] sm:$0xff]
    %v58 = vld [vmem:[%s2 + $0xa0] sm:$0xff]
    %v59 = vld [vmem:[%s2 + $0xa8] sm:$0xff]
    %v60 = vld [vmem:[%s2 + $0xb0] sm:$0xff]
    %v61 = vld [vmem:[%s2 + $0xb8] sm:$0xff]
    %v62 = vld [vmem:[%s2 + $0xc0] sm:$0xff]
    %v63 = vld [vmem:[%s2 + $0xc8] sm:$0xff]
    %v64 = vld [vmem:[%s2 + $0xd0] sm:$0xff]
    %v65 = vld [vmem:[%s2 + $0xd8] sm:$0xff]
    %v66 = vld [vmem:[%s2 + $0xe0] sm:$0xff]
    %v67 = vld [vmem:[%s2 + $0xe8] sm:$0xff]
    %v68 = vld [vmem:[%s2 + $0xf0] sm:$0xff]
    %v69 = vld [vmem:[%s2 + $0xf8] sm:$0xff]
    %v102 = vunpack.c.l.b16 %v38
    %v103 = vunpack.c.h.b16 %v38
    %v104 = vunpack.c.l.b16 %v39
    %v105 = vunpack.c.h.b16 %v39
    %v106 = vunpack.c.l.b16 %v40
    %v107 = vunpack.c.h.b16 %v40
    %v108 = vunpack.c.l.b16 %v41
    %v109 = vunpack.c.h.b16 %v41
    %v110 = vunpack.c.l.b16 %v42
    %v111 = vunpack.c.h.b16 %v42
    %v112 = vunpack.c.l.b16 %v43
    %v113 = vunpack.c.h.b16 %v43
    %v114 = vunpack.c.l.b16 %v44
    %v115 = vunpack.c.h.b16 %v44
    %v116 = vunpack.c.l.b16 %v45
    %v117 = vunpack.c.h.b16 %v45
    %v118 = vunpack.c.l.b16 %v46
    %v119 = vunpack.c.h.b16 %v46
    %v120 = vunpack.c.l.b16 %v47
    %v121 = vunpack.c.h.b16 %v47
    %v122 = vunpack.c.l.b16 %v48
    %v123 = vunpack.c.h.b16 %v48
    %v124 = vunpack.c.l.b16 %v49
    %v125 = vunpack.c.h.b16 %v49
    %v126 = vunpack.c.l.b16 %v50
    %v127 = vunpack.c.h.b16 %v50
    %v128 = vunpack.c.l.b16 %v51
    %v129 = vunpack.c.h.b16 %v51
    %v130 = vunpack.c.l.b16 %v52
    %v131 = vunpack.c.h.b16 %v52
    %v132 = vunpack.c.l.b16 %v53
    %v133 = vunpack.c.h.b16 %v53
    %v134 = vunpack.c.l.b16 %v54
    %v135 = vunpack.c.h.b16 %v54
    %v136 = vunpack.c.l.b16 %v55
    %v137 = vunpack.c.h.b16 %v55
    %v138 = vunpack.c.l.b16 %v56
    %v139 = vunpack.c.h.b16 %v56
    %v140 = vunpack.c.l.b16 %v57
    %v141 = vunpack.c.h.b16 %v57
    %v142 = vunpack.c.l.b16 %v58
    %v143 = vunpack.c.h.b16 %v58
    %v144 = vunpack.c.l.b16 %v59
    %v145 = vunpack.c.h.b16 %v59
    %v146 = vunpack.c.l.b16 %v60
    %v147 = vunpack.c.h.b16 %v60
    %v148 = vunpack.c.l.b16 %v61
    %v149 = vunpack.c.h.b16 %v61
    %v150 = vunpack.c.l.b16 %v62
    %v151 = vunpack.c.h.b16 %v62
    %v152 = vunpack.c.l.b16 %v63
    %v153 = vunpack.c.h.b16 %v63
    %v154 = vunpack.c.l.b16 %v64
    %v155 = vunpack.c.h.b16 %v64
    %v156 = vunpack.c.l.b16 %v65
    %v157 = vunpack.c.h.b16 %v65
    %v158 = vunpack.c.l.b16 %v66
    %v159 = vunpack.c.h.b16 %v66
    %v160 = vunpack.c.l.b16 %v67
    %v161 = vunpack.c.h.b16 %v67
    %v162 = vunpack.c.l.b16 %v68
    %v163 = vunpack.c.h.b16 %v68
    %v164 = vunpack.c.l.b16 %v69
    %v165 = vunpack.c.h.b16 %v69
    %v166 = vpack.c.b16 %v106, %v102
    %v167 = vpack.c.b16 %v107, %v103
    %v168 = vpack.c.b16 %v108, %v104
    %v169 = vpack.c.b16 %v109, %v105
    %v170 = vpack.c.b16 %v114, %v110
    %v171 = vpack.c.b16 %v115, %v111
    %v172 = vpack.c.b16 %v116, %v112
    %v173 = vpack.c.b16 %v117, %v113
    %v174 = vpack.c.b16 %v122, %v118
    %v175 = vpack.c.b16 %v123, %v119
    %v176 = vpack.c.b16 %v124, %v120
    %v177 = vpack.c.b16 %v125, %v121
    %v178 = vpack.c.b16 %v130, %v126
    %v179 = vpack.c.b16 %v131, %v127
    %v180 = vpack.c.b16 %v132, %v128
    %v181 = vpack.c.b16 %v133, %v129
    %v182 = vpack.c.b16 %v138, %v134
    %v183 = vpack.c.b16 %v139, %v135
    %v184 = vpack.c.b16 %v140, %v136
    %v185 = vpack.c.b16 %v141, %v137
    %v186 = vpack.c.b16 %v146, %v142
    %v187 = vpack.c.b16 %v147, %v143
    %v188 = vpack.c.b16 %v148, %v144
    %v189 = vpack.c.b16 %v149, %v145
    %v190 = vpack.c.b16 %v154, %v150
    %v191 = vpack.c.b16 %v155, %v151
    %v192 = vpack.c.b16 %v156, %v152
    %v193 = vpack.c.b16 %v157, %v153
    %v194 = vpack.c.b16 %v162, %v158
    %v195 = vpack.c.b16 %v163, %v159
    %v196 = vpack.c.b16 %v164, %v160
    %v197 = vpack.c.b16 %v165, %v161
    %230 = vmatpush.bf16.msra.mxu0 %v194
    %231 = vmatpush.bf16.msra.mxu0 %v190
    %232 = vmatpush.bf16.msra.mxu0 %v186
    %233 = vmatpush.bf16.msra.mxu0 %v182
    %234 = vmatpush.bf16.msra.mxu0 %v178
    %235 = vmatpush.bf16.msra.mxu0 %v174
    %236 = vmatpush.bf16.msra.mxu0 %v170
    %237 = vmatpush.bf16.msra.mxu0 %v166
    %238 = vmatmul.bf16.gmra.mxu0 %v37
    %v239 = vpop.f32.mrf.mxu0
    %v240 = vadd.f32 0.0, %v239
    %v241 = vpop.f32.mrf.mxu0
    %242 = vdwg.mxu0
    %243 = vmatpush.bf16.msra.mxu0 %v195
    %244 = vmatpush.bf16.msra.mxu0 %v191
    %245 = vmatpush.bf16.msra.mxu0 %v187
    %246 = vmatpush.bf16.msra.mxu0 %v183
    %247 = vmatpush.bf16.msra.mxu0 %v179
    %248 = vmatpush.bf16.msra.mxu0 %v175
    %249 = vmatpush.bf16.msra.mxu0 %v171
    %250 = vmatpush.bf16.msra.mxu0 %v167
    %251 = vmatmul.bf16.gmra.mxu0 %v37
    %v252 = vpop.f32.mrf.mxu0
    %v253 = vadd.f32 0.0, %v252
    %v254 = vpop.f32.mrf.mxu0
    %255 = vdwg.mxu0
    %256 = vmatpush.bf16.msra.mxu0 %v196
    %257 = vmatpush.bf16.msra.mxu0 %v192
    %258 = vmatpush.bf16.msra.mxu0 %v188
    %259 = vmatpush.bf16.msra.mxu0 %v184
    %260 = vmatpush.bf16.msra.mxu0 %v180
    %261 = vmatpush.bf16.msra.mxu0 %v176
    %262 = vmatpush.bf16.msra.mxu0 %v172
    %263 = vmatpush.bf16.msra.mxu0 %v168
    %264 = vmatmul.bf16.gmra.mxu0 %v37
    %v265 = vpop.f32.mrf.mxu0
    %v266 = vadd.f32 0.0, %v265
    %v267 = vpop.f32.mrf.mxu0
    %268 = vdwg.mxu0
    %269 = vmatpush.bf16.msra.mxu0 %v197
    %270 = vmatpush.bf16.msra.mxu0 %v193
    %271 = vmatpush.bf16.msra.mxu0 %v189
    %272 = vmatpush.bf16.msra.mxu0 %v185
    %273 = vmatpush.bf16.msra.mxu0 %v181
    %274 = vmatpush.bf16.msra.mxu0 %v177
    %275 = vmatpush.bf16.msra.mxu0 %v173
    %276 = vmatpush.bf16.msra.mxu0 %v169
    %277 = vmatmul.bf16.gmra.mxu0 %v37
    %v278 = vpop.f32.mrf.mxu0
    %v279 = vadd.f32 0.0, %v278
    %v280 = vpop.f32.mrf.mxu0
    %281 = vdwg.mxu0
    %v282 = vadd.f32 %v33, %v240
    %v283 = vadd.f32 %v34, %v253
    %v284 = vadd.f32 %v35, %v266
    %v285 = vadd.f32 %v36, %v279
    %v286 = vxor.u32 %v282, 2147483648
    %v287 = vxor.u32 %v283, 2147483648
    %v288 = vxor.u32 %v284, 2147483648
    %v289 = vmul.f32 %v286, 1.442695
    %v290 = vpow.pop %v289
    %v291 = vmul.f32 %v287, 1.442695
    %v292 = vpow.pop %v291
    %v293 = vmul.f32 %v288, 1.442695
    %v294 = vpow.pop %v293
    %v295 = vadd.f32 %v290, 1.0
    %v296 = vadd.f32 %v292, 1.0
    %v297 = vadd.f32 %v294, 1.0
    %v298 = vrcp.pop %v295
    %v299 = vmul.f32 %v295, %v298
    %v300 = vsub.f32 1.0, %v299
    %v301 = vmul.f32 %v298, %v300
    %v302 = vadd.f32 %v298, %v301
    %vm303 = vweird.f32 %v295
    %vm304 = vweird.f32 %v298
    %vm305 = vmor %vm303, %vm304
    %v306 = vsel %vm305, %v298, %v302
    %v307 = vand.u32 2147483647, %v295
    %vm308 = vcmp.eq.f32.partialorder %v307, 8.507059e+37
    %v309 = vand.u32 %v295, 2147483648
    %v310 = vor.u32 1.1754944e-38, %v309
    %v311 = vsel %vm308, %v310, %v306
    %v312 = vmul.f32 1.0, %v311
    %v313 = vrcp.pop %v296
    %v314 = vmul.f32 %v296, %v313
    %v315 = vsub.f32 1.0, %v314
    %v316 = vmul.f32 %v313, %v315
    %v317 = vadd.f32 %v313, %v316
    %vm318 = vweird.f32 %v296
    %vm319 = vweird.f32 %v313
    %vm320 = vmor %vm318, %vm319
    %v321 = vsel %vm320, %v313, %v317
    %v322 = vand.u32 2147483647, %v296
    %vm323 = vcmp.eq.f32.partialorder %v322, 8.507059e+37
    %v324 = vand.u32 %v296, 2147483648
    %v325 = vor.u32 1.1754944e-38, %v324
    %v326 = vsel %vm323, %v325, %v321
    %v327 = vmul.f32 1.0, %v326
    %v328 = vrcp.pop %v297
    %v329 = vmul.f32 %v297, %v328
    %v330 = vsub.f32 1.0, %v329
    %v331 = vmul.f32 %v328, %v330
    %v332 = vadd.f32 %v328, %v331
    %vm333 = vweird.f32 %v297
    %vm334 = vweird.f32 %v328
    %vm335 = vmor %vm333, %vm334
    %v336 = vsel %vm335, %v328, %v332
    %v337 = vand.u32 2147483647, %v297
    %vm338 = vcmp.eq.f32.partialorder %v337, 8.507059e+37
    %v339 = vand.u32 %v297, 2147483648
    %v340 = vor.u32 1.1754944e-38, %v339
    %v341 = vsel %vm338, %v340, %v336
    %v342 = vmul.f32 1.0, %v341
    %v343 = vtanh.pop %v285
    %v344 = vmul.f32 %v327, %v29
    %v345 = vmul.f32 %v312, %v343
    %v346 = vadd.f32 %v344, %v345
    %v347 = vtanh.pop %v346
    %v348 = vmul.f32 %v342, %v347
  $region26: #{policy_forward_pallas.1} parent=0 // loop_footer
    %s25 = sadd.s32 %s23, 1
  $region27: #{policy_forward_pallas.1} parent=0 // loop_footer_branch
    %22 = sbr.rel target = $region23
  $region28: #{policy_forward_pallas.1} parent=0 // loop_exit
    _
  %v349 = vpack.c.bf16 %v28, %v28
  %v350 = vld [vmem:[%s3] sm:$0xf]
  %v351 = vld [vmem:[%s3 + $0x4] sm:$0xf]
  %v352 = vld [vmem:[%s3 + $0x8] sm:$0xf]
  %v353 = vld [vmem:[%s3 + $0xc] sm:$0xf]
  %v354 = vld [vmem:[%s3 + $0x10] sm:$0xf]
  %v355 = vld [vmem:[%s3 + $0x14] sm:$0xf]
  %v356 = vld [vmem:[%s3 + $0x18] sm:$0xf]
  %v357 = vld [vmem:[%s3 + $0x1c] sm:$0xf]
  %v358 = vld [vmem:[%s3 + $0x20] sm:$0xf]
  %v359 = vld [vmem:[%s3 + $0x24] sm:$0xf]
  %v360 = vld [vmem:[%s3 + $0x28] sm:$0xf]
  %v361 = vld [vmem:[%s3 + $0x2c] sm:$0xf]
  %v362 = vld [vmem:[%s3 + $0x30] sm:$0xf]
  %v363 = vld [vmem:[%s3 + $0x34] sm:$0xf]
  %v364 = vld [vmem:[%s3 + $0x38] sm:$0xf]
  %v365 = vld [vmem:[%s3 + $0x3c] sm:$0xf]
  %v366 = vld [vmem:[%s4] sm:$0x1]
  %v368 = vperm.slane %v366, 0
  %v386 = vunpack.c.l.b16 %v350
  %v387 = vunpack.c.l.b16 %v351
  %v388 = vunpack.c.l.b16 %v352
  %v389 = vunpack.c.l.b16 %v353
  %v390 = vunpack.c.l.b16 %v354
  %v391 = vunpack.c.l.b16 %v355
  %v392 = vunpack.c.l.b16 %v356
  %v393 = vunpack.c.l.b16 %v357
  %v394 = vunpack.c.l.b16 %v358
  %v395 = vunpack.c.l.b16 %v359
  %v396 = vunpack.c.l.b16 %v360
  %v397 = vunpack.c.l.b16 %v361
  %v398 = vunpack.c.l.b16 %v362
  %v399 = vunpack.c.l.b16 %v363
  %v400 = vunpack.c.l.b16 %v364
  %v401 = vunpack.c.l.b16 %v365
  %v402 = vpack.c.b16 %v387, %v386
  %v403 = vpack.c.b16 %v389, %v388
  %v404 = vpack.c.b16 %v391, %v390
  %v405 = vpack.c.b16 %v393, %v392
  %v406 = vpack.c.b16 %v395, %v394
  %v407 = vpack.c.b16 %v397, %v396
  %v408 = vpack.c.b16 %v399, %v398
  %v409 = vpack.c.b16 %v401, %v400
  %418 = vmatpush.bf16.msra.mxu0 %v409
  %419 = vmatpush.bf16.msra.mxu0 %v408
  %420 = vmatpush.bf16.msra.mxu0 %v407
  %421 = vmatpush.bf16.msra.mxu0 %v406
  %422 = vmatpush.bf16.msra.mxu0 %v405
  %423 = vmatpush.bf16.msra.mxu0 %v404
  %424 = vmatpush.bf16.msra.mxu0 %v403
  %425 = vmatpush.bf16.msra.mxu0 %v402
  %426 = vmatmul.bf16.gmra.mxu0 %v349
  %v427 = vpop.f32.mrf.mxu0
  %v428 = vadd.f32 %v368, %v427
  %v429 = vpop.f32.mrf.mxu0
  %430 = vdwg.mxu0
  %431 = vst [vmem:[%s5] sm:$0xff] %v428
  // Predicated region
  $region29: #{policy_forward_pallas.1} parent=0 // pred_check
    _
  $region30: #{policy_forward_pallas.1} parent=0 // pred_check_branch
    %433 = sbr.rel (0) target = $region32
  $region31: #{policy_forward_pallas.1} parent=0 // pred_region
    _
  $region32: #{policy_forward_pallas.1} parent=0 // pred_fallthru
    _
  // Predicated region
  $region33: #{policy_forward_pallas.1} parent=0 // pred_check
    _
  $region34: #{policy_forward_pallas.1} parent=0 // pred_check_branch
    %435 = sbr.rel (0) target = $region36
  $region35: #{policy_forward_pallas.1} parent=0 // pred_region
    _
  $region36: #{policy_forward_pallas.1} parent=0 // pred_fallthru
    _

</llo_original>
